<compile_context>
chip_gen: v7x
topology: tpu7x:2x2x1
jax: 0.10.0
libtpu: 0.0.40
codegen_flags: <defaults>
</compile_context>

<pallas_src>
import functools

import jax
import jax.numpy as jnp
from jax import lax
from jax.experimental import pallas as pl
from jax.experimental.pallas import tpu as pltpu


def _round_up(v, m):
    return ((v + m - 1) // m) * m


def _fused_line_error_kernel(params_ref, xy_ref, err_ref, *,
                             num_points, zero_threshold):
    # params (SMEM): [center_x_scaled, center_y_scaled, alpha, 1/W, 1/H]
    cx = params_ref[0]
    cy = params_ref[1]
    alpha = params_ref[2]
    inv_w = params_ref[3]
    inv_h = params_ref[4]

    x = xy_ref[0]                      # (n_pad, tl): points on sublanes, lines on lanes
    y = xy_ref[1]
    n_pad, tl = x.shape

    # ScaleWithDimensions + Undistort (radius only ever appears squared).
    dx = x * inv_w - cx
    dy = y * inv_h - cy
    factor = 1.0 + alpha * (dx * dx + dy * dy)
    ux = factor * dx + cx
    uy = factor * dy + cy

    # Point-validity mask on the sublane (point) axis.  Padding rows are edge
    # replicas of the last valid point, so min/max need no sentinels; only the
    # sums (and the residuals) need masking.
    if num_points == n_pad:
        mask = None
        uxs, uys = ux, uy
    else:
        mask = lax.broadcasted_iota(jnp.int32, (n_pad, 1), 0) < num_points
        uxs = jnp.where(mask, ux, 0.0)
        uys = jnp.where(mask, uy, 0.0)

    # Per-line moments of A^T A + min/max for the degenerate Line() branches.
    # Every per-line value below is a lane-dense (1, tl) vector.
    # TODO(synk): if a bundle dump ever shows the XLU reduce slots binding,
    # these sums (+ the err sum) could move onto the idle MXU as a dot with a
    # ones column.
    sxx = jnp.sum(uxs * uxs, axis=0, keepdims=True)
    syy = jnp.sum(uys * uys, axis=0, keepdims=True)
    sxy = jnp.sum(uxs * uys, axis=0, keepdims=True)
    sx1 = jnp.sum(uxs, axis=0, keepdims=True)
    sy1 = jnp.sum(uys, axis=0, keepdims=True)
    min_x = jnp.min(ux, axis=0, keepdims=True)
    max_x = jnp.max(ux, axis=0, keepdims=True)
    min_y = jnp.min(uy, axis=0, keepdims=True)
    max_y = jnp.max(uy, axis=0, keepdims=True)

    # Symmetric 3x3  M = A^T A.
    m00, m11 = sxx, syy
    m22 = jnp.full_like(sxx, float(num_points))
    m01, m02, m12 = sxy, -sx1, -sy1

    # --- smallest eigenvalue: lambda = q + 2*p*t, t = unique root of
    # 4t^3 - 3t = r in [-1, -0.5] (i.e. cos(acos(r)/3 + 2pi/3)) by bisection.
    q = (m00 + m11 + m22) * (1.0 / 3.0)
    p1 = m01 * m01 + m02 * m02 + m12 * m12
    e0, e1, e2 = m00 - q, m11 - q, m22 - q
    p2 = e0 * e0 + e1 * e1 + e2 * e2 + 2.0 * p1
    p = jnp.sqrt(jnp.maximum(p2, 0.0) * (1.0 / 6.0))
    inv_p = 1.0 / jnp.maximum(p, 1e-30)
    b00, b11, b22 = e0 * inv_p, e1 * inv_p, e2 * inv_p
    b01, b02, b12 = m01 * inv_p, m02 * inv_p, m12 * inv_p
    detb = (b00 * (b11 * b22 - b12 * b12)
            - b01 * (b01 * b22 - b12 * b02)
            + b02 * (b01 * b12 - b11 * b02))
    r = jnp.clip(0.5 * detb, -1.0, 1.0)

    lo = jnp.full_like(r, -1.0)        # g(-1) = -(1+r) <= 0
    hi = jnp.full_like(r, -0.5)        # g(-0.5) = 1-r  >= 0, g monotone on bracket
    for _ in range(24):                # f32 resolves a width-0.5 bracket in 24 halvings
        mid = 0.5 * (lo + hi)
        g = mid * (4.0 * mid * mid - 3.0) - r
        go_right = g < 0.0
        lo = jnp.where(go_right, mid, lo)
        hi = jnp.where(go_right, hi, mid)
    lam = q + 2.0 * p * (0.5 * (lo + hi))      # smallest eigenvalue of M

    # --- eigenvector of (M - lam*I): largest-norm cross product of its rows.
    # TODO(synk): if M - lam*I is near rank-1-deficient (repeated smallest
    # eigenvalue with non-axis-aligned points) all cross products vanish and
    # the result is arbitrary -- same pathological case as the eig reference.
    a00, a11, a22 = m00 - lam, m11 - lam, m22 - lam
    a01, a02, a12 = m01, m02, m12
    v01 = (a01 * a12 - a02 * a11, a02 * a01 - a00 * a12, a00 * a11 - a01 * a01)
    v02 = (a01 * a22 - a02 * a12, a02 * a02 - a00 * a22, a00 * a12 - a01 * a02)
    v12 = (a11 * a22 - a12 * a12, a12 * a02 - a01 * a22, a01 * a12 - a11 * a02)
    n01 = v01[0] * v01[0] + v01[1] * v01[1] + v01[2] * v01[2]
    n02 = v02[0] * v02[0] + v02[1] * v02[1] + v02[2] * v02[2]
    n12 = v12[0] * v12[0] + v12[1] * v12[1] + v12[2] * v12[2]
    use02 = n02 > n01
    z0 = jnp.where(use02, v02[0], v01[0])
    z1 = jnp.where(use02, v02[1], v01[1])
    z2 = jnp.where(use02, v02[2], v01[2])
    use12 = n12 > jnp.maximum(n01, n02)
    z0 = jnp.where(use12, v12[0], z0)
    z1 = jnp.where(use12, v12[1], z1)
    z2 = jnp.where(use12, v12[2], z2)

    # Normalize so z0^2 + z1^2 = 1 -> (cos theta, sin theta, rho); no atan2.
    inv_nz = lax.rsqrt(jnp.maximum(z0 * z0 + z1 * z1, 1e-30))
    c_gen = z0 * inv_nz
    s_gen = z1 * inv_nz
    rho_gen = z2 * inv_nz

    # Degenerate branches of Line(): vertical first, then horizontal.
    vert = jnp.abs(min_x - max_x) <= zero_threshold
    horiz = jnp.abs(min_y - max_y) <= zero_threshold
    c = jnp.where(vert, 1.0, jnp.where(horiz, 0.0, c_gen))
    s = jnp.where(vert, 0.0, jnp.where(horiz, 1.0, s_gen))
    rho = jnp.where(vert, min_x, jnp.where(horiz, min_y, rho_gen))

    # Project(): |p' - p|^2 == (c*ux + s*uy - rho)^2 exactly (since c^2+s^2=1).
    d = c * ux + s * uy - rho
    err = d * d
    if mask is not None:
        err = jnp.where(mask, err, 0.0)
    err_ref[...] = jnp.sum(err, axis=0, keepdims=True)   # (1, tl) lane-dense store


def _tile_sizes(num_lines, num_points):
    n_pad = _round_up(max(num_points, 1), 8)
    # Lines live on lanes: TL multiple of 128, capped so (a) one (n_pad, TL)
    # f32 plane stays <= ~512 KiB (v7x-safe), (b) the (1, TL) per-line temps
    # don't blow vreg pressure, (c) the grid keeps >= ~4 steps so both v7x
    # TensorCores are fed.
    tl_budget = max(128, ((131072 // n_pad) // 128) * 128)
    tl_budget = min(tl_budget, 1024)
    tl_target = _round_up(max(1, -(-num_lines // 4)), 128)
    tl = min(tl_budget, tl_target)
    l_pad = _round_up(max(num_lines, 1), tl)
    return n_pad, tl, l_pad


def _vmem_limit_bytes():
    # v5e/v6e have 128 MiB physical VMEM -> roomier scoped limit; keep the
    # conservative 32 MiB on v7x (64 MiB physical) and anything unknown.
    try:
        kind = jax.devices()[0].device_kind.lower()
    except Exception:
        return 32 * 1024 * 1024
    if "v5" in kind or "v6" in kind:
        return 64 * 1024 * 1024
    return 32 * 1024 * 1024


def prepare_points(points):
    """One-time layout pass: (L, N, 2) pixel coords -> padded (2, N_pad, L_pad).

    Points on sublanes, lines on lanes; padding edge-replicates so min/max are
    exact without sentinels.  Hoist this out of an optimizer loop: the points
    are fixed, only alpha/center change between iterations.
    """
    L, N, _ = points.shape
    n_pad, tl, l_pad = _tile_sizes(L, N)
    xy = jnp.transpose(points.astype(jnp.float32), (2, 1, 0))     # (2, N, L)
    xy = jnp.pad(xy, ((0, 0), (0, n_pad - N), (0, l_pad - L)), mode="edge")
    return xy, (L, N, tl)


def line_errors_from_prepared(xy_pad, *, num_lines, num_points, tl,
                              center, alpha, image_sizeHW,
                              zero_threshold=1e-12):
    H, W = image_sizeHW
    _, n_pad, l_pad = xy_pad.shape
    # Parameters exactly as the module's __init__ (center stored scaled).
    params = jnp.array([center[0] / W, center[1] / H, alpha, 1.0 / W, 1.0 / H],
                       dtype=jnp.float32)

    kernel = functools.partial(_fused_line_error_kernel,
                               num_points=num_points,
                               zero_threshold=float(zero_threshold))

    err = pl.pallas_call(
        kernel,
        out_shape=jax.ShapeDtypeStruct((1, l_pad), jnp.float32),
        grid=(l_pad // tl,),
        in_specs=[
            pl.BlockSpec(memory_space=pltpu.MemorySpace.SMEM),    # params
            pl.BlockSpec((2, n_pad, tl), lambda i: (0, 0, i)),    # x/y slab
        ],
        out_specs=pl.BlockSpec((1, tl), lambda i: (0, i)),
        compiler_params=pltpu.CompilerParams(
            dimension_semantics=("parallel",),
            vmem_limit_bytes=_vmem_limit_bytes()),
    )(params, xy_pad)
    return err[0, :num_lines]


def distortion_line_errors(points, *, center, alpha, image_sizeHW,
                           zero_threshold=1e-12):
    """points: (L, N, 2) float32 pixel coords (x, y). Returns (L,) errors."""
    xy_pad, (L, N, tl) = prepare_points(points)
    return line_errors_from_prepared(
        xy_pad, num_lines=L, num_points=N, tl=tl,
        center=center, alpha=alpha, image_sizeHW=image_sizeHW,
        zero_threshold=zero_threshold)


def _reference_line_errors(points, *, center, alpha, image_sizeHW,
                           zero_threshold=1e-12):
    """Plain-JAX reference mirroring the PyTorch module (uses eigh)."""
    H, W = image_sizeHW
    cx, cy = center[0] / W, center[1] / H
    x = points[..., 0].astype(jnp.float32) / W
    y = points[..., 1].astype(jnp.float32) / H
    dx, dy = x - cx, y - cy
    f = 1.0 + alpha * (dx * dx + dy * dy)
    ux, uy = f * dx + cx, f * dy + cy
    A = jnp.stack([ux, uy, -jnp.ones_like(ux)], axis=-1)          # (L, N, 3)
    M = jnp.einsum("lni,lnj->lij", A, A)
    _, evecs = jnp.linalg.eigh(M)
    z = evecs[..., 0]
    zn = z / jnp.sqrt(z[:, 0:1] ** 2 + z[:, 1:2] ** 2)
    c_gen, s_gen, rho_gen = zn[:, 0], zn[:, 1], zn[:, 2]
    min_x, max_x = ux.min(1), ux.max(1)
    min_y, max_y = uy.min(1), uy.max(1)
    vert = jnp.abs(min_x - max_x) <= zero_threshold
    horiz = jnp.abs(min_y - max_y) <= zero_threshold
    c = jnp.where(vert, 1.0, jnp.where(horiz, 0.0, c_gen))
    s = jnp.where(vert, 0.0, jnp.where(horiz, 1.0, s_gen))
    rho = jnp.where(vert, min_x, jnp.where(horiz, min_y, rho_gen))
    d = c[:, None] * ux + s[:, None] * uy - rho[:, None]
    return jnp.sum(d * d, axis=1)


if __name__ == "__main__":
    key = jax.random.PRNGKey(0)
    L, N = 5, 11                      # num lines, points per line (exercises masking)
    image_sizeHW = (480, 640)
    center = (320.0, 240.0)           # (x, y) in pixels
    alpha = 0.05
    H, W = image_sizeHW

    # Deterministic synthetic points roughly along L lines (pixel coords).
    k1, k2, k3 = jax.random.split(key, 3)
    slopes = jax.random.uniform(k1, (L, 1), minval=-0.5, maxval=0.5)
    intercepts = jax.random.uniform(k2, (L, 1), minval=0.2 * H, maxval=0.8 * H)
    xs = jnp.tile(jnp.linspace(0.1 * W, 0.9 * W, N)[None, :], (L, 1))
    ys = slopes * xs + intercepts + 2.0 * jax.random.normal(k3, (L, N))
    points = jnp.stack([xs, ys], axis=-1).astype(jnp.float32)     # (L, N, 2)

    fn = jax.jit(functools.partial(distortion_line_errors,
                                   center=center, alpha=alpha,
                                   image_sizeHW=image_sizeHW))
    err = jax.block_until_ready(fn(points))
    assert err.shape == (L,) and err.dtype == jnp.float32
    assert bool(jnp.all(jnp.isfinite(err)))

    ref = _reference_line_errors(points, center=center, alpha=alpha,
                                 image_sizeHW=image_sizeHW)
    assert bool(jnp.allclose(err, ref, rtol=2e-2, atol=2e-6)), (err, ref)
    print("KERNEL_OK")
</pallas_src>

<mosaic_0001>
module attributes {stable_mosaic.version = 11 : i64} {
  func.func @_fused_line_error_kernel(%arg0: i32, %arg1: memref<5xf32, #tpu.memory_space<smem>>, %arg2: memref<2x16x128xf32, #tpu.memory_space<vmem>>, %arg3: memref<1x128xf32, #tpu.memory_space<vmem>>) attributes {dimension_semantics = [#tpu.dimension_semantics<parallel>], iteration_bounds = array<i64: 1>, scalar_prefetch = 0 : i64, scratch_operands = 0 : i64, tpu.core_type = #tpu.core_type<tc>, window_params = [{transform_indices = @transform_0, window_bounds = array<i64: 5>}, {transform_indices = @transform_1, window_bounds = array<i64: 2, 16, 128>}, {transform_indices = @transform_2, window_bounds = array<i64: 1, 128>}]} {
    %c0 = arith.constant 0 : index
    %0 = memref.load %arg1[%c0] : memref<5xf32, #tpu.memory_space<smem>>
    %c1 = arith.constant 1 : index
    %1 = memref.load %arg1[%c1] : memref<5xf32, #tpu.memory_space<smem>>
    %c2 = arith.constant 2 : index
    %2 = memref.load %arg1[%c2] : memref<5xf32, #tpu.memory_space<smem>>
    %c3 = arith.constant 3 : index
    %3 = memref.load %arg1[%c3] : memref<5xf32, #tpu.memory_space<smem>>
    %c4 = arith.constant 4 : index
    %4 = memref.load %arg1[%c4] : memref<5xf32, #tpu.memory_space<smem>>
    %c0_0 = arith.constant 0 : index
    %c0_1 = arith.constant 0 : index
    %c0_2 = arith.constant 0 : index
    %5 = vector.load %arg2[%c0_0, %c0_1, %c0_2] : memref<2x16x128xf32, #tpu.memory_space<vmem>>, vector<1x16x128xf32>
    %6 = vector.shape_cast %5 : vector<1x16x128xf32> to vector<16x128xf32>
    %c1_3 = arith.constant 1 : index
    %c0_4 = arith.constant 0 : index
    %c0_5 = arith.constant 0 : index
    %7 = vector.load %arg2[%c1_3, %c0_4, %c0_5] : memref<2x16x128xf32, #tpu.memory_space<vmem>>, vector<1x16x128xf32>
    %8 = vector.shape_cast %7 : vector<1x16x128xf32> to vector<16x128xf32>
    %9 = vector.broadcast %3 : f32 to vector<16x128xf32>
    %10 = arith.mulf %6, %9 : vector<16x128xf32>
    %11 = vector.broadcast %0 : f32 to vector<16x128xf32>
    %12 = arith.subf %10, %11 : vector<16x128xf32>
    %13 = vector.broadcast %4 : f32 to vector<16x128xf32>
    %14 = arith.mulf %8, %13 : vector<16x128xf32>
    %15 = vector.broadcast %1 : f32 to vector<16x128xf32>
    %16 = arith.subf %14, %15 : vector<16x128xf32>
    %17 = arith.mulf %12, %12 : vector<16x128xf32>
    %18 = arith.mulf %16, %16 : vector<16x128xf32>
    %19 = arith.addf %17, %18 : vector<16x128xf32>
    %20 = vector.broadcast %2 : f32 to vector<16x128xf32>
    %21 = arith.mulf %20, %19 : vector<16x128xf32>
    %cst = arith.constant 1.000000e+00 : f32
    %22 = vector.broadcast %cst : f32 to vector<16x128xf32>
    %23 = arith.addf %22, %21 : vector<16x128xf32>
    %24 = arith.mulf %23, %12 : vector<16x128xf32>
    %25 = vector.broadcast %0 : f32 to vector<16x128xf32>
    %26 = arith.addf %24, %25 : vector<16x128xf32>
    %27 = arith.mulf %23, %16 : vector<16x128xf32>
    %28 = vector.broadcast %1 : f32 to vector<16x128xf32>
    %29 = arith.addf %27, %28 : vector<16x128xf32>
    %30 = tpu.iota {dimensions = array<i32: 0>} : vector<16x1xi32>
    %c11_i32 = arith.constant 11 : i32
    %31 = vector.broadcast %c11_i32 : i32 to vector<16x1xi32>
    %32 = arith.cmpi slt, %30, %31 : vector<16x1xi32>
    %cst_6 = arith.constant 0.000000e+00 : f32
    %33 = vector.shape_cast %32 : vector<16x1xi1> to vector<16x1xi1>
    %34 = vector.broadcast %33 : vector<16x1xi1> to vector<16x128xi1>
    %35 = vector.broadcast %cst_6 : f32 to vector<16x128xf32>
    %36 = arith.select %34, %26, %35 : vector<16x128xi1>, vector<16x128xf32>
    %cst_7 = arith.constant 0.000000e+00 : f32
    %37 = vector.shape_cast %32 : vector<16x1xi1> to vector<16x1xi1>
    %38 = vector.broadcast %37 : vector<16x1xi1> to vector<16x128xi1>
    %39 = vector.broadcast %cst_7 : f32 to vector<16x128xf32>
    %40 = arith.select %38, %29, %39 : vector<16x128xi1>, vector<16x128xf32>
    %41 = arith.mulf %36, %36 : vector<16x128xf32>
    %cst_8 = arith.constant dense<0.000000e+00> : vector<128xf32>
    %42 = vector.multi_reduction <add>, %41, %cst_8 [0] : vector<16x128xf32> to vector<128xf32>
    %43 = vector.shape_cast %42 : vector<128xf32> to vector<1x128xf32>
    %44 = arith.mulf %40, %40 : vector<16x128xf32>
    %cst_9 = arith.constant dense<0.000000e+00> : vector<128xf32>
    %45 = vector.multi_reduction <add>, %44, %cst_9 [0] : vector<16x128xf32> to vector<128xf32>
    %46 = vector.shape_cast %45 : vector<128xf32> to vector<1x128xf32>
    %47 = arith.mulf %36, %40 : vector<16x128xf32>
    %cst_10 = arith.constant dense<0.000000e+00> : vector<128xf32>
    %48 = vector.multi_reduction <add>, %47, %cst_10 [0] : vector<16x128xf32> to vector<128xf32>
    %49 = vector.shape_cast %48 : vector<128xf32> to vector<1x128xf32>
    %cst_11 = arith.constant dense<0.000000e+00> : vector<128xf32>
    %50 = vector.multi_reduction <add>, %36, %cst_11 [0] : vector<16x128xf32> to vector<128xf32>
    %51 = vector.shape_cast %50 : vector<128xf32> to vector<1x128xf32>
    %cst_12 = arith.constant dense<0.000000e+00> : vector<128xf32>
    %52 = vector.multi_reduction <add>, %40, %cst_12 [0] : vector<16x128xf32> to vector<128xf32>
    %53 = vector.shape_cast %52 : vector<128xf32> to vector<1x128xf32>
    %cst_13 = arith.constant dense<0x7F800000> : vector<128xf32>
    %54 = vector.multi_reduction <minimumf>, %26, %cst_13 [0] : vector<16x128xf32> to vector<128xf32>
    %55 = vector.shape_cast %54 : vector<128xf32> to vector<1x128xf32>
    %cst_14 = arith.constant dense<0xFF800000> : vector<128xf32>
    %56 = vector.multi_reduction <maximumf>, %26, %cst_14 [0] : vector<16x128xf32> to vector<128xf32>
    %57 = vector.shape_cast %56 : vector<128xf32> to vector<1x128xf32>
    %cst_15 = arith.constant dense<0x7F800000> : vector<128xf32>
    %58 = vector.multi_reduction <minimumf>, %29, %cst_15 [0] : vector<16x128xf32> to vector<128xf32>
    %59 = vector.shape_cast %58 : vector<128xf32> to vector<1x128xf32>
    %cst_16 = arith.constant dense<0xFF800000> : vector<128xf32>
    %60 = vector.multi_reduction <maximumf>, %29, %cst_16 [0] : vector<16x128xf32> to vector<128xf32>
    %61 = vector.shape_cast %60 : vector<128xf32> to vector<1x128xf32>
    %cst_17 = arith.constant 1.100000e+01 : f32
    %62 = vector.broadcast %cst_17 : f32 to vector<1x128xf32>
    %cst_18 = arith.constant 0.000000e+00 : f32
    %63 = vector.broadcast %cst_18 : f32 to vector<1x128xf32>
    %64 = arith.subf %63, %51 : vector<1x128xf32>
    %cst_19 = arith.constant 0.000000e+00 : f32
    %65 = vector.broadcast %cst_19 : f32 to vector<1x128xf32>
    %66 = arith.subf %65, %53 : vector<1x128xf32>
    %67 = arith.addf %43, %46 : vector<1x128xf32>
    %68 = arith.addf %67, %62 : vector<1x128xf32>
    %cst_20 = arith.constant 0.333333343 : f32
    %69 = vector.broadcast %cst_20 : f32 to vector<1x128xf32>
    %70 = arith.mulf %68, %69 : vector<1x128xf32>
    %71 = arith.mulf %49, %49 : vector<1x128xf32>
    %72 = arith.mulf %64, %64 : vector<1x128xf32>
    %73 = arith.addf %71, %72 : vector<1x128xf32>
    %74 = arith.mulf %66, %66 : vector<1x128xf32>
    %75 = arith.addf %73, %74 : vector<1x128xf32>
    %76 = arith.subf %43, %70 : vector<1x128xf32>
    %77 = arith.subf %46, %70 : vector<1x128xf32>
    %78 = arith.subf %62, %70 : vector<1x128xf32>
    %79 = arith.mulf %76, %76 : vector<1x128xf32>
    %80 = arith.mulf %77, %77 : vector<1x128xf32>
    %81 = arith.addf %79, %80 : vector<1x128xf32>
    %82 = arith.mulf %78, %78 : vector<1x128xf32>
    %83 = arith.addf %81, %82 : vector<1x128xf32>
    %cst_21 = arith.constant 2.000000e+00 : f32
    %84 = vector.broadcast %cst_21 : f32 to vector<1x128xf32>
    %85 = arith.mulf %84, %75 : vector<1x128xf32>
    %86 = arith.addf %83, %85 : vector<1x128xf32>
    %cst_22 = arith.constant 0.000000e+00 : f32
    %87 = vector.broadcast %cst_22 : f32 to vector<1x128xf32>
    %88 = arith.maximumf %86, %87 : vector<1x128xf32>
    %cst_23 = arith.constant 0.166666672 : f32
    %89 = vector.broadcast %cst_23 : f32 to vector<1x128xf32>
    %90 = arith.mulf %88, %89 : vector<1x128xf32>
    %91 = math.sqrt %90 : vector<1x128xf32>
    %cst_24 = arith.constant 1.000000e-30 : f32
    %92 = vector.broadcast %cst_24 : f32 to vector<1x128xf32>
    %93 = arith.maximumf %91, %92 : vector<1x128xf32>
    %cst_25 = arith.constant 1.000000e+00 : f32
    %94 = vector.broadcast %cst_25 : f32 to vector<1x128xf32>
    %95 = arith.divf %94, %93 : vector<1x128xf32>
    %96 = arith.mulf %76, %95 : vector<1x128xf32>
    %97 = arith.mulf %77, %95 : vector<1x128xf32>
    %98 = arith.mulf %78, %95 : vector<1x128xf32>
    %99 = arith.mulf %49, %95 : vector<1x128xf32>
    %100 = arith.mulf %64, %95 : vector<1x128xf32>
    %101 = arith.mulf %66, %95 : vector<1x128xf32>
    %102 = arith.mulf %97, %98 : vector<1x128xf32>
    %103 = arith.mulf %101, %101 : vector<1x128xf32>
    %104 = arith.subf %102, %103 : vector<1x128xf32>
    %105 = arith.mulf %96, %104 : vector<1x128xf32>
    %106 = arith.mulf %99, %98 : vector<1x128xf32>
    %107 = arith.mulf %101, %100 : vector<1x128xf32>
    %108 = arith.subf %106, %107 : vector<1x128xf32>
    %109 = arith.mulf %99, %108 : vector<1x128xf32>
    %110 = arith.subf %105, %109 : vector<1x128xf32>
    %111 = arith.mulf %99, %101 : vector<1x128xf32>
    %112 = arith.mulf %97, %100 : vector<1x128xf32>
    %113 = arith.subf %111, %112 : vector<1x128xf32>
    %114 = arith.mulf %100, %113 : vector<1x128xf32>
    %115 = arith.addf %110, %114 : vector<1x128xf32>
    %cst_26 = arith.constant 5.000000e-01 : f32
    %116 = vector.broadcast %cst_26 : f32 to vector<1x128xf32>
    %117 = arith.mulf %116, %115 : vector<1x128xf32>
    %cst_27 = arith.constant -1.000000e+00 : f32
    %cst_28 = arith.constant 1.000000e+00 : f32
    %118 = vector.broadcast %cst_27 : f32 to vector<1x128xf32>
    %119 = arith.maximumf %118, %117 : vector<1x128xf32>
    %120 = vector.broadcast %cst_28 : f32 to vector<1x128xf32>
    %121 = arith.minimumf %120, %119 : vector<1x128xf32>
    %cst_29 = arith.constant -1.000000e+00 : f32
    %122 = vector.broadcast %cst_29 : f32 to vector<1x128xf32>
    %cst_30 = arith.constant -5.000000e-01 : f32
    %123 = vector.broadcast %cst_30 : f32 to vector<1x128xf32>
    %124 = arith.addf %122, %123 : vector<1x128xf32>
    %cst_31 = arith.constant 5.000000e-01 : f32
    %125 = vector.broadcast %cst_31 : f32 to vector<1x128xf32>
    %126 = arith.mulf %125, %124 : vector<1x128xf32>
    %cst_32 = arith.constant 4.000000e+00 : f32
    %127 = vector.broadcast %cst_32 : f32 to vector<1x128xf32>
    %128 = arith.mulf %127, %126 : vector<1x128xf32>
    %129 = arith.mulf %128, %126 : vector<1x128xf32>
    %cst_33 = arith.constant 3.000000e+00 : f32
    %130 = vector.broadcast %cst_33 : f32 to vector<1x128xf32>
    %131 = arith.subf %129, %130 : vector<1x128xf32>
    %132 = arith.mulf %126, %131 : vector<1x128xf32>
    %133 = arith.subf %132, %121 : vector<1x128xf32>
    %cst_34 = arith.constant 0.000000e+00 : f32
    %134 = vector.broadcast %cst_34 : f32 to vector<1x128xf32>
    %135 = arith.cmpf olt, %133, %134 : vector<1x128xf32>
    %136 = arith.select %135, %126, %122 : vector<1x128xi1>, vector<1x128xf32>
    %137 = arith.select %135, %123, %126 : vector<1x128xi1>, vector<1x128xf32>
    %138 = arith.addf %136, %137 : vector<1x128xf32>
    %cst_35 = arith.constant 5.000000e-01 : f32
    %139 = vector.broadcast %cst_35 : f32 to vector<1x128xf32>
    %140 = arith.mulf %139, %138 : vector<1x128xf32>
    %cst_36 = arith.constant 4.000000e+00 : f32
    %141 = vector.broadcast %cst_36 : f32 to vector<1x128xf32>
    %142 = arith.mulf %141, %140 : vector<1x128xf32>
    %143 = arith.mulf %142, %140 : vector<1x128xf32>
    %cst_37 = arith.constant 3.000000e+00 : f32
    %144 = vector.broadcast %cst_37 : f32 to vector<1x128xf32>
    %145 = arith.subf %143, %144 : vector<1x128xf32>
    %146 = arith.mulf %140, %145 : vector<1x128xf32>
    %147 = arith.subf %146, %121 : vector<1x128xf32>
    %cst_38 = arith.constant 0.000000e+00 : f32
    %148 = vector.broadcast %cst_38 : f32 to vector<1x128xf32>
    %149 = arith.cmpf olt, %147, %148 : vector<1x128xf32>
    %150 = arith.select %149, %140, %136 : vector<1x128xi1>, vector<1x128xf32>
    %151 = arith.select %149, %137, %140 : vector<1x128xi1>, vector<1x128xf32>
    %152 = arith.addf %150, %151 : vector<1x128xf32>
    %cst_39 = arith.constant 5.000000e-01 : f32
    %153 = vector.broadcast %cst_39 : f32 to vector<1x128xf32>
    %154 = arith.mulf %153, %152 : vector<1x128xf32>
    %cst_40 = arith.constant 4.000000e+00 : f32
    %155 = vector.broadcast %cst_40 : f32 to vector<1x128xf32>
    %156 = arith.mulf %155, %154 : vector<1x128xf32>
    %157 = arith.mulf %156, %154 : vector<1x128xf32>
    %cst_41 = arith.constant 3.000000e+00 : f32
    %158 = vector.broadcast %cst_41 : f32 to vector<1x128xf32>
    %159 = arith.subf %157, %158 : vector<1x128xf32>
    %160 = arith.mulf %154, %159 : vector<1x128xf32>
    %161 = arith.subf %160, %121 : vector<1x128xf32>
    %cst_42 = arith.constant 0.000000e+00 : f32
    %162 = vector.broadcast %cst_42 : f32 to vector<1x128xf32>
    %163 = arith.cmpf olt, %161, %162 : vector<1x128xf32>
    %164 = arith.select %163, %154, %150 : vector<1x128xi1>, vector<1x128xf32>
    %165 = arith.select %163, %151, %154 : vector<1x128xi1>, vector<1x128xf32>
    %166 = arith.addf %164, %165 : vector<1x128xf32>
    %cst_43 = arith.constant 5.000000e-01 : f32
    %167 = vector.broadcast %cst_43 : f32 to vector<1x128xf32>
    %168 = arith.mulf %167, %166 : vector<1x128xf32>
    %cst_44 = arith.constant 4.000000e+00 : f32
    %169 = vector.broadcast %cst_44 : f32 to vector<1x128xf32>
    %170 = arith.mulf %169, %168 : vector<1x128xf32>
    %171 = arith.mulf %170, %168 : vector<1x128xf32>
    %cst_45 = arith.constant 3.000000e+00 : f32
    %172 = vector.broadcast %cst_45 : f32 to vector<1x128xf32>
    %173 = arith.subf %171, %172 : vector<1x128xf32>
    %174 = arith.mulf %168, %173 : vector<1x128xf32>
    %175 = arith.subf %174, %121 : vector<1x128xf32>
    %cst_46 = arith.constant 0.000000e+00 : f32
    %176 = vector.broadcast %cst_46 : f32 to vector<1x128xf32>
    %177 = arith.cmpf olt, %175, %176 : vector<1x128xf32>
    %178 = arith.select %177, %168, %164 : vector<1x128xi1>, vector<1x128xf32>
    %179 = arith.select %177, %165, %168 : vector<1x128xi1>, vector<1x128xf32>
    %180 = arith.addf %178, %179 : vector<1x128xf32>
    %cst_47 = arith.constant 5.000000e-01 : f32
    %181 = vector.broadcast %cst_47 : f32 to vector<1x128xf32>
    %182 = arith.mulf %181, %180 : vector<1x128xf32>
    %cst_48 = arith.constant 4.000000e+00 : f32
    %183 = vector.broadcast %cst_48 : f32 to vector<1x128xf32>
    %184 = arith.mulf %183, %182 : vector<1x128xf32>
    %185 = arith.mulf %184, %182 : vector<1x128xf32>
    %cst_49 = arith.constant 3.000000e+00 : f32
    %186 = vector.broadcast %cst_49 : f32 to vector<1x128xf32>
    %187 = arith.subf %185, %186 : vector<1x128xf32>
    %188 = arith.mulf %182, %187 : vector<1x128xf32>
    %189 = arith.subf %188, %121 : vector<1x128xf32>
    %cst_50 = arith.constant 0.000000e+00 : f32
    %190 = vector.broadcast %cst_50 : f32 to vector<1x128xf32>
    %191 = arith.cmpf olt, %189, %190 : vector<1x128xf32>
    %192 = arith.select %191, %182, %178 : vector<1x128xi1>, vector<1x128xf32>
    %193 = arith.select %191, %179, %182 : vector<1x128xi1>, vector<1x128xf32>
    %194 = arith.addf %192, %193 : vector<1x128xf32>
    %cst_51 = arith.constant 5.000000e-01 : f32
    %195 = vector.broadcast %cst_51 : f32 to vector<1x128xf32>
    %196 = arith.mulf %195, %194 : vector<1x128xf32>
    %cst_52 = arith.constant 4.000000e+00 : f32
    %197 = vector.broadcast %cst_52 : f32 to vector<1x128xf32>
    %198 = arith.mulf %197, %196 : vector<1x128xf32>
    %199 = arith.mulf %198, %196 : vector<1x128xf32>
    %cst_53 = arith.constant 3.000000e+00 : f32
    %200 = vector.broadcast %cst_53 : f32 to vector<1x128xf32>
    %201 = arith.subf %199, %200 : vector<1x128xf32>
    %202 = arith.mulf %196, %201 : vector<1x128xf32>
    %203 = arith.subf %202, %121 : vector<1x128xf32>
    %cst_54 = arith.constant 0.000000e+00 : f32
    %204 = vector.broadcast %cst_54 : f32 to vector<1x128xf32>
    %205 = arith.cmpf olt, %203, %204 : vector<1x128xf32>
    %206 = arith.select %205, %196, %192 : vector<1x128xi1>, vector<1x128xf32>
    %207 = arith.select %205, %193, %196 : vector<1x128xi1>, vector<1x128xf32>
    %208 = arith.addf %206, %207 : vector<1x128xf32>
    %cst_55 = arith.constant 5.000000e-01 : f32
    %209 = vector.broadcast %cst_55 : f32 to vector<1x128xf32>
    %210 = arith.mulf %209, %208 : vector<1x128xf32>
    %cst_56 = arith.constant 4.000000e+00 : f32
    %211 = vector.broadcast %cst_56 : f32 to vector<1x128xf32>
    %212 = arith.mulf %211, %210 : vector<1x128xf32>
    %213 = arith.mulf %212, %210 : vector<1x128xf32>
    %cst_57 = arith.constant 3.000000e+00 : f32
    %214 = vector.broadcast %cst_57 : f32 to vector<1x128xf32>
    %215 = arith.subf %213, %214 : vector<1x128xf32>
    %216 = arith.mulf %210, %215 : vector<1x128xf32>
    %217 = arith.subf %216, %121 : vector<1x128xf32>
    %cst_58 = arith.constant 0.000000e+00 : f32
    %218 = vector.broadcast %cst_58 : f32 to vector<1x128xf32>
    %219 = arith.cmpf olt, %217, %218 : vector<1x128xf32>
    %220 = arith.select %219, %210, %206 : vector<1x128xi1>, vector<1x128xf32>
    %221 = arith.select %219, %207, %210 : vector<1x128xi1>, vector<1x128xf32>
    %222 = arith.addf %220, %221 : vector<1x128xf32>
    %cst_59 = arith.constant 5.000000e-01 : f32
    %223 = vector.broadcast %cst_59 : f32 to vector<1x128xf32>
    %224 = arith.mulf %223, %222 : vector<1x128xf32>
    %cst_60 = arith.constant 4.000000e+00 : f32
    %225 = vector.broadcast %cst_60 : f32 to vector<1x128xf32>
    %226 = arith.mulf %225, %224 : vector<1x128xf32>
    %227 = arith.mulf %226, %224 : vector<1x128xf32>
    %cst_61 = arith.constant 3.000000e+00 : f32
    %228 = vector.broadcast %cst_61 : f32 to vector<1x128xf32>
    %229 = arith.subf %227, %228 : vector<1x128xf32>
    %230 = arith.mulf %224, %229 : vector<1x128xf32>
    %231 = arith.subf %230, %121 : vector<1x128xf32>
    %cst_62 = arith.constant 0.000000e+00 : f32
    %232 = vector.broadcast %cst_62 : f32 to vector<1x128xf32>
    %233 = arith.cmpf olt, %231, %232 : vector<1x128xf32>
    %234 = arith.select %233, %224, %220 : vector<1x128xi1>, vector<1x128xf32>
    %235 = arith.select %233, %221, %224 : vector<1x128xi1>, vector<1x128xf32>
    %236 = arith.addf %234, %235 : vector<1x128xf32>
    %cst_63 = arith.constant 5.000000e-01 : f32
    %237 = vector.broadcast %cst_63 : f32 to vector<1x128xf32>
    %238 = arith.mulf %237, %236 : vector<1x128xf32>
    %cst_64 = arith.constant 4.000000e+00 : f32
    %239 = vector.broadcast %cst_64 : f32 to vector<1x128xf32>
    %240 = arith.mulf %239, %238 : vector<1x128xf32>
    %241 = arith.mulf %240, %238 : vector<1x128xf32>
    %cst_65 = arith.constant 3.000000e+00 : f32
    %242 = vector.broadcast %cst_65 : f32 to vector<1x128xf32>
    %243 = arith.subf %241, %242 : vector<1x128xf32>
    %244 = arith.mulf %238, %243 : vector<1x128xf32>
    %245 = arith.subf %244, %121 : vector<1x128xf32>
    %cst_66 = arith.constant 0.000000e+00 : f32
    %246 = vector.broadcast %cst_66 : f32 to vector<1x128xf32>
    %247 = arith.cmpf olt, %245, %246 : vector<1x128xf32>
    %248 = arith.select %247, %238, %234 : vector<1x128xi1>, vector<1x128xf32>
    %249 = arith.select %247, %235, %238 : vector<1x128xi1>, vector<1x128xf32>
    %250 = arith.addf %248, %249 : vector<1x128xf32>
    %cst_67 = arith.constant 5.000000e-01 : f32
    %251 = vector.broadcast %cst_67 : f32 to vector<1x128xf32>
    %252 = arith.mulf %251, %250 : vector<1x128xf32>
    %cst_68 = arith.constant 4.000000e+00 : f32
    %253 = vector.broadcast %cst_68 : f32 to vector<1x128xf32>
    %254 = arith.mulf %253, %252 : vector<1x128xf32>
    %255 = arith.mulf %254, %252 : vector<1x128xf32>
    %cst_69 = arith.constant 3.000000e+00 : f32
    %256 = vector.broadcast %cst_69 : f32 to vector<1x128xf32>
    %257 = arith.subf %255, %256 : vector<1x128xf32>
    %258 = arith.mulf %252, %257 : vector<1x128xf32>
    %259 = arith.subf %258, %121 : vector<1x128xf32>
    %cst_70 = arith.constant 0.000000e+00 : f32
    %260 = vector.broadcast %cst_70 : f32 to vector<1x128xf32>
    %261 = arith.cmpf olt, %259, %260 : vector<1x128xf32>
    %262 = arith.select %261, %252, %248 : vector<1x128xi1>, vector<1x128xf32>
    %263 = arith.select %261, %249, %252 : vector<1x128xi1>, vector<1x128xf32>
    %264 = arith.addf %262, %263 : vector<1x128xf32>
    %cst_71 = arith.constant 5.000000e-01 : f32
    %265 = vector.broadcast %cst_71 : f32 to vector<1x128xf32>
    %266 = arith.mulf %265, %264 : vector<1x128xf32>
    %cst_72 = arith.constant 4.000000e+00 : f32
    %267 = vector.broadcast %cst_72 : f32 to vector<1x128xf32>
    %268 = arith.mulf %267, %266 : vector<1x128xf32>
    %269 = arith.mulf %268, %266 : vector<1x128xf32>
    %cst_73 = arith.constant 3.000000e+00 : f32
    %270 = vector.broadcast %cst_73 : f32 to vector<1x128xf32>
    %271 = arith.subf %269, %270 : vector<1x128xf32>
    %272 = arith.mulf %266, %271 : vector<1x128xf32>
    %273 = arith.subf %272, %121 : vector<1x128xf32>
    %cst_74 = arith.constant 0.000000e+00 : f32
    %274 = vector.broadcast %cst_74 : f32 to vector<1x128xf32>
    %275 = arith.cmpf olt, %273, %274 : vector<1x128xf32>
    %276 = arith.select %275, %266, %262 : vector<1x128xi1>, vector<1x128xf32>
    %277 = arith.select %275, %263, %266 : vector<1x128xi1>, vector<1x128xf32>
    %278 = arith.addf %276, %277 : vector<1x128xf32>
    %cst_75 = arith.constant 5.000000e-01 : f32
    %279 = vector.broadcast %cst_75 : f32 to vector<1x128xf32>
    %280 = arith.mulf %279, %278 : vector<1x128xf32>
    %cst_76 = arith.constant 4.000000e+00 : f32
    %281 = vector.broadcast %cst_76 : f32 to vector<1x128xf32>
    %282 = arith.mulf %281, %280 : vector<1x128xf32>
    %283 = arith.mulf %282, %280 : vector<1x128xf32>
    %cst_77 = arith.constant 3.000000e+00 : f32
    %284 = vector.broadcast %cst_77 : f32 to vector<1x128xf32>
    %285 = arith.subf %283, %284 : vector<1x128xf32>
    %286 = arith.mulf %280, %285 : vector<1x128xf32>
    %287 = arith.subf %286, %121 : vector<1x128xf32>
    %cst_78 = arith.constant 0.000000e+00 : f32
    %288 = vector.broadcast %cst_78 : f32 to vector<1x128xf32>
    %289 = arith.cmpf olt, %287, %288 : vector<1x128xf32>
    %290 = arith.select %289, %280, %276 : vector<1x128xi1>, vector<1x128xf32>
    %291 = arith.select %289, %277, %280 : vector<1x128xi1>, vector<1x128xf32>
    %292 = arith.addf %290, %291 : vector<1x128xf32>
    %cst_79 = arith.constant 5.000000e-01 : f32
    %293 = vector.broadcast %cst_79 : f32 to vector<1x128xf32>
    %294 = arith.mulf %293, %292 : vector<1x128xf32>
    %cst_80 = arith.constant 4.000000e+00 : f32
    %295 = vector.broadcast %cst_80 : f32 to vector<1x128xf32>
    %296 = arith.mulf %295, %294 : vector<1x128xf32>
    %297 = arith.mulf %296, %294 : vector<1x128xf32>
    %cst_81 = arith.constant 3.000000e+00 : f32
    %298 = vector.broadcast %cst_81 : f32 to vector<1x128xf32>
    %299 = arith.subf %297, %298 : vector<1x128xf32>
    %300 = arith.mulf %294, %299 : vector<1x128xf32>
    %301 = arith.subf %300, %121 : vector<1x128xf32>
    %cst_82 = arith.constant 0.000000e+00 : f32
    %302 = vector.broadcast %cst_82 : f32 to vector<1x128xf32>
    %303 = arith.cmpf olt, %301, %302 : vector<1x128xf32>
    %304 = arith.select %303, %294, %290 : vector<1x128xi1>, vector<1x128xf32>
    %305 = arith.select %303, %291, %294 : vector<1x128xi1>, vector<1x128xf32>
    %306 = arith.addf %304, %305 : vector<1x128xf32>
    %cst_83 = arith.constant 5.000000e-01 : f32
    %307 = vector.broadcast %cst_83 : f32 to vector<1x128xf32>
    %308 = arith.mulf %307, %306 : vector<1x128xf32>
    %cst_84 = arith.constant 4.000000e+00 : f32
    %309 = vector.broadcast %cst_84 : f32 to vector<1x128xf32>
    %310 = arith.mulf %309, %308 : vector<1x128xf32>
    %311 = arith.mulf %310, %308 : vector<1x128xf32>
    %cst_85 = arith.constant 3.000000e+00 : f32
    %312 = vector.broadcast %cst_85 : f32 to vector<1x128xf32>
    %313 = arith.subf %311, %312 : vector<1x128xf32>
    %314 = arith.mulf %308, %313 : vector<1x128xf32>
    %315 = arith.subf %314, %121 : vector<1x128xf32>
    %cst_86 = arith.constant 0.000000e+00 : f32
    %316 = vector.broadcast %cst_86 : f32 to vector<1x128xf32>
    %317 = arith.cmpf olt, %315, %316 : vector<1x128xf32>
    %318 = arith.select %317, %308, %304 : vector<1x128xi1>, vector<1x128xf32>
    %319 = arith.select %317, %305, %308 : vector<1x128xi1>, vector<1x128xf32>
    %320 = arith.addf %318, %319 : vector<1x128xf32>
    %cst_87 = arith.constant 5.000000e-01 : f32
    %321 = vector.broadcast %cst_87 : f32 to vector<1x128xf32>
    %322 = arith.mulf %321, %320 : vector<1x128xf32>
    %cst_88 = arith.constant 4.000000e+00 : f32
    %323 = vector.broadcast %cst_88 : f32 to vector<1x128xf32>
    %324 = arith.mulf %323, %322 : vector<1x128xf32>
    %325 = arith.mulf %324, %322 : vector<1x128xf32>
    %cst_89 = arith.constant 3.000000e+00 : f32
    %326 = vector.broadcast %cst_89 : f32 to vector<1x128xf32>
    %327 = arith.subf %325, %326 : vector<1x128xf32>
    %328 = arith.mulf %322, %327 : vector<1x128xf32>
    %329 = arith.subf %328, %121 : vector<1x128xf32>
    %cst_90 = arith.constant 0.000000e+00 : f32
    %330 = vector.broadcast %cst_90 : f32 to vector<1x128xf32>
    %331 = arith.cmpf olt, %329, %330 : vector<1x128xf32>
    %332 = arith.select %331, %322, %318 : vector<1x128xi1>, vector<1x128xf32>
    %333 = arith.select %331, %319, %322 : vector<1x128xi1>, vector<1x128xf32>
    %334 = arith.addf %332, %333 : vector<1x128xf32>
    %cst_91 = arith.constant 5.000000e-01 : f32
    %335 = vector.broadcast %cst_91 : f32 to vector<1x128xf32>
    %336 = arith.mulf %335, %334 : vector<1x128xf32>
    %cst_92 = arith.constant 4.000000e+00 : f32
    %337 = vector.broadcast %cst_92 : f32 to vector<1x128xf32>
    %338 = arith.mulf %337, %336 : vector<1x128xf32>
    %339 = arith.mulf %338, %336 : vector<1x128xf32>
    %cst_93 = arith.constant 3.000000e+00 : f32
    %340 = vector.broadcast %cst_93 : f32 to vector<1x128xf32>
    %341 = arith.subf %339, %340 : vector<1x128xf32>
    %342 = arith.mulf %336, %341 : vector<1x128xf32>
    %343 = arith.subf %342, %121 : vector<1x128xf32>
    %cst_94 = arith.constant 0.000000e+00 : f32
    %344 = vector.broadcast %cst_94 : f32 to vector<1x128xf32>
    %345 = arith.cmpf olt, %343, %344 : vector<1x128xf32>
    %346 = arith.select %345, %336, %332 : vector<1x128xi1>, vector<1x128xf32>
    %347 = arith.select %345, %333, %336 : vector<1x128xi1>, vector<1x128xf32>
    %348 = arith.addf %346, %347 : vector<1x128xf32>
    %cst_95 = arith.constant 5.000000e-01 : f32
    %349 = vector.broadcast %cst_95 : f32 to vector<1x128xf32>
    %350 = arith.mulf %349, %348 : vector<1x128xf32>
    %cst_96 = arith.constant 4.000000e+00 : f32
    %351 = vector.broadcast %cst_96 : f32 to vector<1x128xf32>
    %352 = arith.mulf %351, %350 : vector<1x128xf32>
    %353 = arith.mulf %352, %350 : vector<1x128xf32>
    %cst_97 = arith.constant 3.000000e+00 : f32
    %354 = vector.broadcast %cst_97 : f32 to vector<1x128xf32>
    %355 = arith.subf %353, %354 : vector<1x128xf32>
    %356 = arith.mulf %350, %355 : vector<1x128xf32>
    %357 = arith.subf %356, %121 : vector<1x128xf32>
    %cst_98 = arith.constant 0.000000e+00 : f32
    %358 = vector.broadcast %cst_98 : f32 to vector<1x128xf32>
    %359 = arith.cmpf olt, %357, %358 : vector<1x128xf32>
    %360 = arith.select %359, %350, %346 : vector<1x128xi1>, vector<1x128xf32>
    %361 = arith.select %359, %347, %350 : vector<1x128xi1>, vector<1x128xf32>
    %362 = arith.addf %360, %361 : vector<1x128xf32>
    %cst_99 = arith.constant 5.000000e-01 : f32
    %363 = vector.broadcast %cst_99 : f32 to vector<1x128xf32>
    %364 = arith.mulf %363, %362 : vector<1x128xf32>
    %cst_100 = arith.constant 4.000000e+00 : f32
    %365 = vector.broadcast %cst_100 : f32 to vector<1x128xf32>
    %366 = arith.mulf %365, %364 : vector<1x128xf32>
    %367 = arith.mulf %366, %364 : vector<1x128xf32>
    %cst_101 = arith.constant 3.000000e+00 : f32
    %368 = vector.broadcast %cst_101 : f32 to vector<1x128xf32>
    %369 = arith.subf %367, %368 : vector<1x128xf32>
    %370 = arith.mulf %364, %369 : vector<1x128xf32>
    %371 = arith.subf %370, %121 : vector<1x128xf32>
    %cst_102 = arith.constant 0.000000e+00 : f32
    %372 = vector.broadcast %cst_102 : f32 to vector<1x128xf32>
    %373 = arith.cmpf olt, %371, %372 : vector<1x128xf32>
    %374 = arith.select %373, %364, %360 : vector<1x128xi1>, vector<1x128xf32>
    %375 = arith.select %373, %361, %364 : vector<1x128xi1>, vector<1x128xf32>
    %376 = arith.addf %374, %375 : vector<1x128xf32>
    %cst_103 = arith.constant 5.000000e-01 : f32
    %377 = vector.broadcast %cst_103 : f32 to vector<1x128xf32>
    %378 = arith.mulf %377, %376 : vector<1x128xf32>
    %cst_104 = arith.constant 4.000000e+00 : f32
    %379 = vector.broadcast %cst_104 : f32 to vector<1x128xf32>
    %380 = arith.mulf %379, %378 : vector<1x128xf32>
    %381 = arith.mulf %380, %378 : vector<1x128xf32>
    %cst_105 = arith.constant 3.000000e+00 : f32
    %382 = vector.broadcast %cst_105 : f32 to vector<1x128xf32>
    %383 = arith.subf %381, %382 : vector<1x128xf32>
    %384 = arith.mulf %378, %383 : vector<1x128xf32>
    %385 = arith.subf %384, %121 : vector<1x128xf32>
    %cst_106 = arith.constant 0.000000e+00 : f32
    %386 = vector.broadcast %cst_106 : f32 to vector<1x128xf32>
    %387 = arith.cmpf olt, %385, %386 : vector<1x128xf32>
    %388 = arith.select %387, %378, %374 : vector<1x128xi1>, vector<1x128xf32>
    %389 = arith.select %387, %375, %378 : vector<1x128xi1>, vector<1x128xf32>
    %390 = arith.addf %388, %389 : vector<1x128xf32>
    %cst_107 = arith.constant 5.000000e-01 : f32
    %391 = vector.broadcast %cst_107 : f32 to vector<1x128xf32>
    %392 = arith.mulf %391, %390 : vector<1x128xf32>
    %cst_108 = arith.constant 4.000000e+00 : f32
    %393 = vector.broadcast %cst_108 : f32 to vector<1x128xf32>
    %394 = arith.mulf %393, %392 : vector<1x128xf32>
    %395 = arith.mulf %394, %392 : vector<1x128xf32>
    %cst_109 = arith.constant 3.000000e+00 : f32
    %396 = vector.broadcast %cst_109 : f32 to vector<1x128xf32>
    %397 = arith.subf %395, %396 : vector<1x128xf32>
    %398 = arith.mulf %392, %397 : vector<1x128xf32>
    %399 = arith.subf %398, %121 : vector<1x128xf32>
    %cst_110 = arith.constant 0.000000e+00 : f32
    %400 = vector.broadcast %cst_110 : f32 to vector<1x128xf32>
    %401 = arith.cmpf olt, %399, %400 : vector<1x128xf32>
    %402 = arith.select %401, %392, %388 : vector<1x128xi1>, vector<1x128xf32>
    %403 = arith.select %401, %389, %392 : vector<1x128xi1>, vector<1x128xf32>
    %404 = arith.addf %402, %403 : vector<1x128xf32>
    %cst_111 = arith.constant 5.000000e-01 : f32
    %405 = vector.broadcast %cst_111 : f32 to vector<1x128xf32>
    %406 = arith.mulf %405, %404 : vector<1x128xf32>
    %cst_112 = arith.constant 4.000000e+00 : f32
    %407 = vector.broadcast %cst_112 : f32 to vector<1x128xf32>
    %408 = arith.mulf %407, %406 : vector<1x128xf32>
    %409 = arith.mulf %408, %406 : vector<1x128xf32>
    %cst_113 = arith.constant 3.000000e+00 : f32
    %410 = vector.broadcast %cst_113 : f32 to vector<1x128xf32>
    %411 = arith.subf %409, %410 : vector<1x128xf32>
    %412 = arith.mulf %406, %411 : vector<1x128xf32>
    %413 = arith.subf %412, %121 : vector<1x128xf32>
    %cst_114 = arith.constant 0.000000e+00 : f32
    %414 = vector.broadcast %cst_114 : f32 to vector<1x128xf32>
    %415 = arith.cmpf olt, %413, %414 : vector<1x128xf32>
    %416 = arith.select %415, %406, %402 : vector<1x128xi1>, vector<1x128xf32>
    %417 = arith.select %415, %403, %406 : vector<1x128xi1>, vector<1x128xf32>
    %418 = arith.addf %416, %417 : vector<1x128xf32>
    %cst_115 = arith.constant 5.000000e-01 : f32
    %419 = vector.broadcast %cst_115 : f32 to vector<1x128xf32>
    %420 = arith.mulf %419, %418 : vector<1x128xf32>
    %cst_116 = arith.constant 4.000000e+00 : f32
    %421 = vector.broadcast %cst_116 : f32 to vector<1x128xf32>
    %422 = arith.mulf %421, %420 : vector<1x128xf32>
    %423 = arith.mulf %422, %420 : vector<1x128xf32>
    %cst_117 = arith.constant 3.000000e+00 : f32
    %424 = vector.broadcast %cst_117 : f32 to vector<1x128xf32>
    %425 = arith.subf %423, %424 : vector<1x128xf32>
    %426 = arith.mulf %420, %425 : vector<1x128xf32>
    %427 = arith.subf %426, %121 : vector<1x128xf32>
    %cst_118 = arith.constant 0.000000e+00 : f32
    %428 = vector.broadcast %cst_118 : f32 to vector<1x128xf32>
    %429 = arith.cmpf olt, %427, %428 : vector<1x128xf32>
    %430 = arith.select %429, %420, %416 : vector<1x128xi1>, vector<1x128xf32>
    %431 = arith.select %429, %417, %420 : vector<1x128xi1>, vector<1x128xf32>
    %432 = arith.addf %430, %431 : vector<1x128xf32>
    %cst_119 = arith.constant 5.000000e-01 : f32
    %433 = vector.broadcast %cst_119 : f32 to vector<1x128xf32>
    %434 = arith.mulf %433, %432 : vector<1x128xf32>
    %cst_120 = arith.constant 4.000000e+00 : f32
    %435 = vector.broadcast %cst_120 : f32 to vector<1x128xf32>
    %436 = arith.mulf %435, %434 : vector<1x128xf32>
    %437 = arith.mulf %436, %434 : vector<1x128xf32>
    %cst_121 = arith.constant 3.000000e+00 : f32
    %438 = vector.broadcast %cst_121 : f32 to vector<1x128xf32>
    %439 = arith.subf %437, %438 : vector<1x128xf32>
    %440 = arith.mulf %434, %439 : vector<1x128xf32>
    %441 = arith.subf %440, %121 : vector<1x128xf32>
    %cst_122 = arith.constant 0.000000e+00 : f32
    %442 = vector.broadcast %cst_122 : f32 to vector<1x128xf32>
    %443 = arith.cmpf olt, %441, %442 : vector<1x128xf32>
    %444 = arith.select %443, %434, %430 : vector<1x128xi1>, vector<1x128xf32>
    %445 = arith.select %443, %431, %434 : vector<1x128xi1>, vector<1x128xf32>
    %446 = arith.addf %444, %445 : vector<1x128xf32>
    %cst_123 = arith.constant 5.000000e-01 : f32
    %447 = vector.broadcast %cst_123 : f32 to vector<1x128xf32>
    %448 = arith.mulf %447, %446 : vector<1x128xf32>
    %cst_124 = arith.constant 4.000000e+00 : f32
    %449 = vector.broadcast %cst_124 : f32 to vector<1x128xf32>
    %450 = arith.mulf %449, %448 : vector<1x128xf32>
    %451 = arith.mulf %450, %448 : vector<1x128xf32>
    %cst_125 = arith.constant 3.000000e+00 : f32
    %452 = vector.broadcast %cst_125 : f32 to vector<1x128xf32>
    %453 = arith.subf %451, %452 : vector<1x128xf32>
    %454 = arith.mulf %448, %453 : vector<1x128xf32>
    %455 = arith.subf %454, %121 : vector<1x128xf32>
    %cst_126 = arith.constant 0.000000e+00 : f32
    %456 = vector.broadcast %cst_126 : f32 to vector<1x128xf32>
    %457 = arith.cmpf olt, %455, %456 : vector<1x128xf32>
    %458 = arith.select %457, %448, %444 : vector<1x128xi1>, vector<1x128xf32>
    %459 = arith.select %457, %445, %448 : vector<1x128xi1>, vector<1x128xf32>
    %cst_127 = arith.constant 2.000000e+00 : f32
    %460 = vector.broadcast %cst_127 : f32 to vector<1x128xf32>
    %461 = arith.mulf %460, %91 : vector<1x128xf32>
    %462 = arith.addf %458, %459 : vector<1x128xf32>
    %cst_128 = arith.constant 5.000000e-01 : f32
    %463 = vector.broadcast %cst_128 : f32 to vector<1x128xf32>
    %464 = arith.mulf %463, %462 : vector<1x128xf32>
    %465 = arith.mulf %461, %464 : vector<1x128xf32>
    %466 = arith.addf %70, %465 : vector<1x128xf32>
    %467 = arith.subf %43, %466 : vector<1x128xf32>
    %468 = arith.subf %46, %466 : vector<1x128xf32>
    %469 = arith.subf %62, %466 : vector<1x128xf32>
    %470 = arith.mulf %49, %66 : vector<1x128xf32>
    %471 = arith.mulf %64, %468 : vector<1x128xf32>
    %472 = arith.subf %470, %471 : vector<1x128xf32>
    %473 = arith.mulf %64, %49 : vector<1x128xf32>
    %474 = arith.mulf %467, %66 : vector<1x128xf32>
    %475 = arith.subf %473, %474 : vector<1x128xf32>
    %476 = arith.mulf %467, %468 : vector<1x128xf32>
    %477 = arith.mulf %49, %49 : vector<1x128xf32>
    %478 = arith.subf %476, %477 : vector<1x128xf32>
    %479 = arith.mulf %49, %469 : vector<1x128xf32>
    %480 = arith.mulf %64, %66 : vector<1x128xf32>
    %481 = arith.subf %479, %480 : vector<1x128xf32>
    %482 = arith.mulf %64, %64 : vector<1x128xf32>
    %483 = arith.mulf %467, %469 : vector<1x128xf32>
    %484 = arith.subf %482, %483 : vector<1x128xf32>
    %485 = arith.mulf %467, %66 : vector<1x128xf32>
    %486 = arith.mulf %49, %64 : vector<1x128xf32>
    %487 = arith.subf %485, %486 : vector<1x128xf32>
    %488 = arith.mulf %468, %469 : vector<1x128xf32>
    %489 = arith.mulf %66, %66 : vector<1x128xf32>
    %490 = arith.subf %488, %489 : vector<1x128xf32>
    %491 = arith.mulf %66, %64 : vector<1x128xf32>
    %492 = arith.mulf %49, %469 : vector<1x128xf32>
    %493 = arith.subf %491, %492 : vector<1x128xf32>
    %494 = arith.mulf %49, %66 : vector<1x128xf32>
    %495 = arith.mulf %468, %64 : vector<1x128xf32>
    %496 = arith.subf %494, %495 : vector<1x128xf32>
    %497 = arith.mulf %472, %472 : vector<1x128xf32>
    %498 = arith.mulf %475, %475 : vector<1x128xf32>
    %499 = arith.addf %497, %498 : vector<1x128xf32>
    %500 = arith.mulf %478, %478 : vector<1x128xf32>
    %501 = arith.addf %499, %500 : vector<1x128xf32>
    %502 = arith.mulf %481, %481 : vector<1x128xf32>
    %503 = arith.mulf %484, %484 : vector<1x128xf32>
    %504 = arith.addf %502, %503 : vector<1x128xf32>
    %505 = arith.mulf %487, %487 : vector<1x128xf32>
    %506 = arith.addf %504, %505 : vector<1x128xf32>
    %507 = arith.mulf %490, %490 : vector<1x128xf32>
    %508 = arith.mulf %493, %493 : vector<1x128xf32>
    %509 = arith.addf %507, %508 : vector<1x128xf32>
    %510 = arith.mulf %496, %496 : vector<1x128xf32>
    %511 = arith.addf %509, %510 : vector<1x128xf32>
    %512 = arith.cmpf ogt, %506, %501 : vector<1x128xf32>
    %513 = arith.select %512, %481, %472 : vector<1x128xi1>, vector<1x128xf32>
    %514 = arith.select %512, %484, %475 : vector<1x128xi1>, vector<1x128xf32>
    %515 = arith.select %512, %487, %478 : vector<1x128xi1>, vector<1x128xf32>
    %516 = arith.maximumf %501, %506 : vector<1x128xf32>
    %517 = arith.cmpf ogt, %511, %516 : vector<1x128xf32>
    %518 = arith.select %517, %490, %513 : vector<1x128xi1>, vector<1x128xf32>
    %519 = arith.select %517, %493, %514 : vector<1x128xi1>, vector<1x128xf32>
    %520 = arith.select %517, %496, %515 : vector<1x128xi1>, vector<1x128xf32>
    %521 = arith.mulf %518, %518 : vector<1x128xf32>
    %522 = arith.mulf %519, %519 : vector<1x128xf32>
    %523 = arith.addf %521, %522 : vector<1x128xf32>
    %cst_129 = arith.constant 1.000000e-30 : f32
    %524 = vector.broadcast %cst_129 : f32 to vector<1x128xf32>
    %525 = arith.maximumf %523, %524 : vector<1x128xf32>
    %526 = math.rsqrt %525 : vector<1x128xf32>
    %527 = arith.mulf %518, %526 : vector<1x128xf32>
    %528 = arith.mulf %519, %526 : vector<1x128xf32>
    %529 = arith.mulf %520, %526 : vector<1x128xf32>
    %530 = arith.subf %55, %57 : vector<1x128xf32>
    %531 = math.absf %530 : vector<1x128xf32>
    %cst_130 = arith.constant 9.99999996E-13 : f32
    %532 = vector.broadcast %cst_130 : f32 to vector<1x128xf32>
    %533 = arith.cmpf ole, %531, %532 : vector<1x128xf32>
    %534 = arith.subf %59, %61 : vector<1x128xf32>
    %535 = math.absf %534 : vector<1x128xf32>
    %cst_131 = arith.constant 9.99999996E-13 : f32
    %536 = vector.broadcast %cst_131 : f32 to vector<1x128xf32>
    %537 = arith.cmpf ole, %535, %536 : vector<1x128xf32>
    %cst_132 = arith.constant 0.000000e+00 : f32
    %538 = vector.broadcast %cst_132 : f32 to vector<1x128xf32>
    %539 = arith.select %537, %538, %527 : vector<1x128xi1>, vector<1x128xf32>
    %cst_133 = arith.constant 1.000000e+00 : f32
    %540 = vector.broadcast %cst_133 : f32 to vector<1x128xf32>
    %541 = arith.select %533, %540, %539 : vector<1x128xi1>, vector<1x128xf32>
    %cst_134 = arith.constant 1.000000e+00 : f32
    %542 = vector.broadcast %cst_134 : f32 to vector<1x128xf32>
    %543 = arith.select %537, %542, %528 : vector<1x128xi1>, vector<1x128xf32>
    %cst_135 = arith.constant 0.000000e+00 : f32
    %544 = vector.broadcast %cst_135 : f32 to vector<1x128xf32>
    %545 = arith.select %533, %544, %543 : vector<1x128xi1>, vector<1x128xf32>
    %546 = arith.select %537, %59, %529 : vector<1x128xi1>, vector<1x128xf32>
    %547 = arith.select %533, %55, %546 : vector<1x128xi1>, vector<1x128xf32>
    %548 = vector.broadcast %541 : vector<1x128xf32> to vector<16x128xf32>
    %549 = arith.mulf %548, %26 : vector<16x128xf32>
    %550 = vector.broadcast %545 : vector<1x128xf32> to vector<16x128xf32>
    %551 = arith.mulf %550, %29 : vector<16x128xf32>
    %552 = arith.addf %549, %551 : vector<16x128xf32>
    %553 = vector.broadcast %547 : vector<1x128xf32> to vector<16x128xf32>
    %554 = arith.subf %552, %553 : vector<16x128xf32>
    %555 = arith.mulf %554, %554 : vector<16x128xf32>
    %cst_136 = arith.constant 0.000000e+00 : f32
    %556 = vector.shape_cast %32 : vector<16x1xi1> to vector<16x1xi1>
    %557 = vector.broadcast %556 : vector<16x1xi1> to vector<16x128xi1>
    %558 = vector.broadcast %cst_136 : f32 to vector<16x128xf32>
    %559 = arith.select %557, %555, %558 : vector<16x128xi1>, vector<16x128xf32>
    %cst_137 = arith.constant dense<0.000000e+00> : vector<128xf32>
    %560 = vector.multi_reduction <add>, %559, %cst_137 [0] : vector<16x128xf32> to vector<128xf32>
    %561 = vector.shape_cast %560 : vector<128xf32> to vector<1x128xf32>
    %c0_138 = arith.constant 0 : index
    %c0_139 = arith.constant 0 : index
    %562 = vector.load %arg3[%c0_138, %c0_139] : memref<1x128xf32, #tpu.memory_space<vmem>>, vector<1x128xf32>
    tpu.vector_store %arg3[%c0_138, %c0_139], %561 {strides = array<i32>} : memref<1x128xf32, #tpu.memory_space<vmem>>, vector<1x128xf32>,
    return
  }
  func.func @transform_0(%arg0: i32) -> i32 {
    %c0_i32 = arith.constant 0 : i32
    %c0_i32_0 = arith.constant 0 : i32
    return %c0_i32 : i32
  }
  func.func @transform_1(%arg0: i32) -> (i32, i32, i32) {
    %c0_i32 = arith.constant 0 : i32
    %c0_i32_0 = arith.constant 0 : i32
    %c0_i32_1 = arith.constant 0 : i32
    return %c0_i32, %c0_i32_0, %arg0 : i32, i32, i32
  }
  func.func @transform_2(%arg0: i32) -> (i32, i32) {
    %c0_i32 = arith.constant 0 : i32
    %c0_i32_0 = arith.constant 0 : i32
    return %c0_i32, %arg0 : i32, i32
  }
}

</mosaic_0001>

<llo_original>
// kernel: distortion_line_errors.1
$region0: #{distortion_line_errors.1}
  #allocation0 [shape = 'u32[]', space=smem, size = 0x4, offset = 0x4, fixed_abs, tag = 'smem constant byte address 0x4 - core index']
  #allocation1 [shape = 'u32[144,128]{1,0:T(1,128)}', space=vmem, size = 0x12000, scoped, tag = 'internal scratch']
  %s0 = inlined_call_operand.vmem [shape: f32[5], index: 0, kind: input, shape index: {}]
  %s1 = inlined_call_operand.vmem [shape: f32[2,16,128], index: 1, kind: input, shape index: {}]
  %s2 = inlined_call_operand.vmem [shape: f32[1,128], index: 2, kind: output, shape index: {}]
  %s3 = sld [smem:[#allocation0]]
  $region22: #{distortion_line_errors.1} parent=0
    _
  %s5 = ssub.s32 1, %s3
  %s6 = scalar_select 0, %s5, %s3
  $region1: #{distortion_line_errors.1} parent=0
    #allocation2 [shape = 'u8[512]{0}', space=smem, size = 0x200, scoped, tag = 'input window, operand 0, single buffered']
    #allocation3 [shape = 's32[1]{0}', space=sflag, size = 0x4, scoped, tag = 'scoped memory for distortion_line_errors.1']
    %7 = vsyncpa [#allocation3], 0
    // Predicated region
    $region2: #{distortion_line_errors.1} parent=1 // pred_check
      _
    $region3: #{distortion_line_errors.1} parent=1 // pred_check_branch
      %9 = sbr.rel (0) target = $region5
    $region4: #{distortion_line_errors.1} parent=1 // pred_region
      %s11 = ssub.s32 16, 16
      %12 = vsyncadd [#allocation3], %s11
      %s14 = sshll.u32 %s0, 4
      %s15 = int_to_ptr.vmem [resolvable:$true] %s14
      %17 = dma.vmem_to_smem %s15, 16, [#allocation2], [#allocation3]
    $region5: #{distortion_line_errors.1} parent=1 // pred_fallthru
      _
    // Predicated region
    $region6: #{distortion_line_errors.1} parent=1 // pred_check
      _
    $region7: #{distortion_line_errors.1} parent=1 // pred_check_branch
      %19 = sbr.rel (0) target = $region9
    $region8: #{distortion_line_errors.1} parent=1 // pred_region
      _
    $region9: #{distortion_line_errors.1} parent=1 // pred_fallthru
      _
    // Predicated region
    $region10: #{distortion_line_errors.1} parent=1 // pred_check
      _
    $region11: #{distortion_line_errors.1} parent=1 // pred_check_branch
      %21 = sbr.rel (0) target = $region13
    $region12: #{distortion_line_errors.1} parent=1 // pred_region
      %22 = dma.done [#allocation3], 16
    $region13: #{distortion_line_errors.1} parent=1 // pred_fallthru
      _
    %23 = sfence
    %s24 = sld [smem:[#allocation2]]
    %s25 = sld [smem:[#allocation2 + $0x1]]
    %s26 = sld [smem:[#allocation2 + $0x2]]
    %s27 = sld [smem:[#allocation2 + $0x3]]
    %s28 = sld [smem:[#allocation2 + $0x4]]
    %v29 = vld [vmem:[%s1] sm:$0xff]
    %v30 = vld [vmem:[%s1 + $0x8] sm:$0xff]
    %s31 = scalar_lea.vmem %s1, 16
    %v32 = vld [vmem:[%s31] sm:$0xff]
    %v33 = vld [vmem:[%s31 + $0x8] sm:$0xff]
    %v34 = vstv %s27
    %v35 = vmul.f32 %v29, %v34
    %v36 = vmul.f32 %v30, %v34
    %v37 = vstv %s24
    %v38 = vsub.f32 %v35, %v37
    %v39 = vsub.f32 %v36, %v37
    %v40 = vstv %s28
    %v41 = vmul.f32 %v32, %v40
    %v42 = vmul.f32 %v33, %v40
    %v43 = vstv %s25
    %v44 = vsub.f32 %v41, %v43
    %v45 = vsub.f32 %v42, %v43
    %v46 = vmul.f32 %v38, %v38
    %v47 = vmul.f32 %v39, %v39
    %v48 = vmul.f32 %v44, %v44
    %v49 = vmul.f32 %v45, %v45
    %v50 = vadd.f32 %v46, %v48
    %v51 = vadd.f32 %v47, %v49
    %v52 = vstv %s26
    %v53 = vmul.f32 %v52, %v50
    %v54 = vmul.f32 %v52, %v51
    %v55 = vadd.f32 %v53, 1.0
    %v56 = vadd.f32 %v54, 1.0
    %v57 = vmul.f32 %v55, %v38
    %v58 = vmul.f32 %v56, %v39
    %v59 = vadd.f32 %v57, %v37
    %v60 = vadd.f32 %v58, %v37
    %v61 = vmul.f32 %v55, %v44
    %v62 = vmul.f32 %v56, %v45
    %v63 = vadd.f32 %v61, %v43
    %v64 = vadd.f32 %v62, %v43
    %v65 = vlaneseq
    %v66 = vshrl.u32 %v65, 7
    %v67 = vadd.s32 %v66, 8
    %vm68 = vcmp.lt.s32.totalorder %v66, 11
    %vm69 = vcmp.lt.s32.totalorder %v67, 11
    %v70 = vsel %vm68, 1, 0
    %v71 = vsel %vm69, 1, 0
    %vm72 = vcmp.eq.s32.totalorder %v70, 1
    %vm73 = vcmp.eq.s32.totalorder %v71, 1
    %v74 = vsel %vm72, %v59, 0.0
    %v75 = vsel %vm73, %v60, 0.0
    %v76 = vsel %vm72, %v63, 0.0
    %v77 = vsel %vm73, %v64, 0.0
    %v78 = vmul.f32 %v74, %v74
    %v79 = vmul.f32 %v75, %v75
    %v80 = vadd.f32 %v78, %v79
    %v81 = vrot.slane %v80, 4
    %v82 = vadd.f32 %v80, %v81
    %v83 = vrot.slane %v82, 2
    %v84 = vadd.f32 %v82, %v83
    %v85 = vrot.slane %v84, 1
    %v86 = vadd.f32 %v84, %v85
    %v87 = vmul.f32 %v76, %v76
    %v88 = vmul.f32 %v77, %v77
    %v89 = vadd.f32 %v87, %v88
    %v90 = vrot.slane %v89, 4
    %v91 = vadd.f32 %v89, %v90
    %v92 = vrot.slane %v91, 2
    %v93 = vadd.f32 %v91, %v92
    %v94 = vrot.slane %v93, 1
    %v95 = vadd.f32 %v93, %v94
    %v96 = vmul.f32 %v74, %v76
    %v97 = vmul.f32 %v75, %v77
    %v98 = vadd.f32 %v96, %v97
    %v99 = vrot.slane %v98, 4
    %v100 = vadd.f32 %v98, %v99
    %v101 = vrot.slane %v100, 2
    %v102 = vadd.f32 %v100, %v101
    %v103 = vrot.slane %v102, 1
    %v104 = vadd.f32 %v102, %v103
    %v105 = vadd.f32 %v74, %v75
    %v106 = vrot.slane %v105, 4
    %v107 = vadd.f32 %v105, %v106
    %v108 = vrot.slane %v107, 2
    %v109 = vadd.f32 %v107, %v108
    %v110 = vrot.slane %v109, 1
    %v111 = vadd.f32 %v109, %v110
    %v112 = vadd.f32 %v76, %v77
    %v113 = vrot.slane %v112, 4
    %v114 = vadd.f32 %v112, %v113
    %v115 = vrot.slane %v114, 2
    %v116 = vadd.f32 %v114, %v115
    %v117 = vrot.slane %v116, 1
    %v118 = vadd.f32 %v116, %v117
    %v119 = vmin.f32 %v59, %v60
    %v120 = vrot.slane %v119, 4
    %v121 = vmin.f32 %v119, %v120
    %v122 = vrot.slane %v121, 2
    %v123 = vmin.f32 %v121, %v122
    %v124 = vrot.slane %v123, 1
    %v125 = vmin.f32 %v123, %v124
    %v126 = vmax.f32 %v59, %v60
    %v127 = vrot.slane %v126, 4
    %v128 = vmax.f32 %v126, %v127
    %v129 = vrot.slane %v128, 2
    %v130 = vmax.f32 %v128, %v129
    %v131 = vrot.slane %v130, 1
    %v132 = vmax.f32 %v130, %v131
    %v133 = vmin.f32 %v63, %v64
    %v134 = vrot.slane %v133, 4
    %v135 = vmin.f32 %v133, %v134
    %v136 = vrot.slane %v135, 2
    %v137 = vmin.f32 %v135, %v136
    %v138 = vrot.slane %v137, 1
    %v139 = vmin.f32 %v137, %v138
    %v140 = vmax.f32 %v63, %v64
    %v141 = vrot.slane %v140, 4
    %v142 = vmax.f32 %v140, %v141
    %v143 = vrot.slane %v142, 2
    %v144 = vmax.f32 %v142, %v143
    %v145 = vrot.slane %v144, 1
    %v146 = vmax.f32 %v144, %v145
    %v147 = vsub.f32 0.0, %v111
    %v148 = vsub.f32 0.0, %v118
    %v149 = vadd.f32 %v86, %v95
    %v150 = vadd.f32 %v149, 11.0
    %v151 = vmul.f32 %v150, 0.33333334
    %v152 = vmul.f32 %v104, %v104
    %v153 = vmul.f32 %v147, %v147
    %v154 = vadd.f32 %v152, %v153
    %v155 = vmul.f32 %v148, %v148
    %v156 = vadd.f32 %v154, %v155
    %v157 = vsub.f32 %v86, %v151
    %v158 = vsub.f32 %v95, %v151
    %v159 = vsub.f32 11.0, %v151
    %v160 = vmul.f32 %v157, %v157
    %v161 = vmul.f32 %v158, %v158
    %v162 = vadd.f32 %v160, %v161
    %v163 = vmul.f32 %v159, %v159
    %v164 = vadd.f32 %v162, %v163
    %v165 = vmul.f32 %v156, 2.0
    %v166 = vadd.f32 %v164, %v165
    %v167 = vmax.f32 %v166, 0.0
    %v168 = vmul.f32 %v167, 0.16666667
    %v169 = vrsqrt.pop %v168
    %v170 = vmul.f32 %v168, %v169
    %vm171 = vcmp.eq.f32.partialorder %v168, inf
    %v172 = vsel %vm171, %v168, %v170
    %vm173 = vcmp.eq.f32.partialorder %v168, 0.0
    %v174 = vand.u32 %v168, 2147483648
    %v175 = vsel %vm173, %v174, %v172
    %v176 = vmax.f32 %v175, 1e-30
    %v177 = vrcp.pop %v176
    %v178 = vmul.f32 1.0, %v177
    %v179 = vmul.f32 %v157, %v178
    %v180 = vmul.f32 %v158, %v178
    %v181 = vmul.f32 %v159, %v178
    %v182 = vmul.f32 %v104, %v178
    %v183 = vmul.f32 %v147, %v178
    %v184 = vmul.f32 %v148, %v178
    %v185 = vmul.f32 %v180, %v181
    %v186 = vmul.f32 %v184, %v184
    %v187 = vsub.f32 %v185, %v186
    %v188 = vmul.f32 %v179, %v187
    %v189 = vmul.f32 %v182, %v181
    %v190 = vmul.f32 %v184, %v183
    %v191 = vsub.f32 %v189, %v190
    %v192 = vmul.f32 %v182, %v191
    %v193 = vsub.f32 %v188, %v192
    %v194 = vmul.f32 %v182, %v184
    %v195 = vmul.f32 %v180, %v183
    %v196 = vsub.f32 %v194, %v195
    %v197 = vmul.f32 %v183, %v196
    %v198 = vadd.f32 %v193, %v197
    %v199 = vmul.f32 %v198, 0.5
    %v200 = vmax.f32 %v199, -1.0
    %v201 = vmin.f32 %v200, 1.0
    %v202 = vsub.f32 0.5625, %v201
    %vm203 = vcmp.lt.f32.partialorder %v202, 0.0
    %v204 = vsel %vm203, -0.75, -1.0
    %v205 = vsel %vm203, -0.5, -0.75
    %v206 = vadd.f32 %v204, %v205
    %v207 = vmul.f32 %v206, 0.5
    %v208 = vmul.f32 %v207, 4.0
    %v209 = vmul.f32 %v208, %v207
    %v210 = vsub.f32 %v209, 3.0
    %v211 = vmul.f32 %v207, %v210
    %v212 = vsub.f32 %v211, %v201
    %vm213 = vcmp.lt.f32.partialorder %v212, 0.0
    %v214 = vsel %vm213, %v207, %v204
    %v215 = vsel %vm213, %v205, %v207
    %v216 = vadd.f32 %v214, %v215
    %v217 = vmul.f32 %v216, 0.5
    %v218 = vmul.f32 %v217, 4.0
    %v219 = vmul.f32 %v218, %v217
    %v220 = vsub.f32 %v219, 3.0
    %v221 = vmul.f32 %v217, %v220
    %v222 = vsub.f32 %v221, %v201
    %vm223 = vcmp.lt.f32.partialorder %v222, 0.0
    %v224 = vsel %vm223, %v217, %v214
    %v225 = vsel %vm223, %v215, %v217
    %v226 = vadd.f32 %v224, %v225
    %v227 = vmul.f32 %v226, 0.5
    %v228 = vmul.f32 %v227, 4.0
    %v229 = vmul.f32 %v228, %v227
    %v230 = vsub.f32 %v229, 3.0
    %v231 = vmul.f32 %v227, %v230
    %v232 = vsub.f32 %v231, %v201
    %vm233 = vcmp.lt.f32.partialorder %v232, 0.0
    %v234 = vsel %vm233, %v227, %v224
    %v235 = vsel %vm233, %v225, %v227
    %v236 = vadd.f32 %v234, %v235
    %v237 = vmul.f32 %v236, 0.5
    %v238 = vmul.f32 %v237, 4.0
    %v239 = vmul.f32 %v238, %v237
    %v240 = vsub.f32 %v239, 3.0
    %v241 = vmul.f32 %v237, %v240
    %v242 = vsub.f32 %v241, %v201
    %vm243 = vcmp.lt.f32.partialorder %v242, 0.0
    %v244 = vsel %vm243, %v237, %v234
    %v245 = vsel %vm243, %v235, %v237
    %v246 = vadd.f32 %v244, %v245
    %v247 = vmul.f32 %v246, 0.5
    %v248 = vmul.f32 %v247, 4.0
    %v249 = vmul.f32 %v248, %v247
    %v250 = vsub.f32 %v249, 3.0
    %v251 = vmul.f32 %v247, %v250
    %v252 = vsub.f32 %v251, %v201
    %vm253 = vcmp.lt.f32.partialorder %v252, 0.0
    %v254 = vsel %vm253, %v247, %v244
    %v255 = vsel %vm253, %v245, %v247
    %v256 = vadd.f32 %v254, %v255
    %v257 = vmul.f32 %v256, 0.5
    %v258 = vmul.f32 %v257, 4.0
    %v259 = vmul.f32 %v258, %v257
    %v260 = vsub.f32 %v259, 3.0
    %v261 = vmul.f32 %v257, %v260
    %v262 = vsub.f32 %v261, %v201
    %vm263 = vcmp.lt.f32.partialorder %v262, 0.0
    %v264 = vsel %vm263, %v257, %v254
    %v265 = vsel %vm263, %v255, %v257
    %v266 = vadd.f32 %v264, %v265
    %v267 = vmul.f32 %v266, 0.5
    %v268 = vmul.f32 %v267, 4.0
    %v269 = vmul.f32 %v268, %v267
    %v270 = vsub.f32 %v269, 3.0
    %v271 = vmul.f32 %v267, %v270
    %v272 = vsub.f32 %v271, %v201
    %vm273 = vcmp.lt.f32.partialorder %v272, 0.0
    %v274 = vsel %vm273, %v267, %v264
    %v275 = vsel %vm273, %v265, %v267
    %v276 = vadd.f32 %v274, %v275
    %v277 = vmul.f32 %v276, 0.5
    %v278 = vmul.f32 %v277, 4.0
    %v279 = vmul.f32 %v278, %v277
    %v280 = vsub.f32 %v279, 3.0
    %v281 = vmul.f32 %v277, %v280
    %v282 = vsub.f32 %v281, %v201
    %vm283 = vcmp.lt.f32.partialorder %v282, 0.0
    %v284 = vsel %vm283, %v277, %v274
    %v285 = vsel %vm283, %v275, %v277
    %v286 = vadd.f32 %v284, %v285
    %v287 = vmul.f32 %v286, 0.5
    %v288 = vmul.f32 %v287, 4.0
    %v289 = vmul.f32 %v288, %v287
    %v290 = vsub.f32 %v289, 3.0
    %v291 = vmul.f32 %v287, %v290
    %v292 = vsub.f32 %v291, %v201
    %vm293 = vcmp.lt.f32.partialorder %v292, 0.0
    %v294 = vsel %vm293, %v287, %v284
    %v295 = vsel %vm293, %v285, %v287
    %v296 = vadd.f32 %v294, %v295
    %v297 = vmul.f32 %v296, 0.5
    %v298 = vmul.f32 %v297, 4.0
    %v299 = vmul.f32 %v298, %v297
    %v300 = vsub.f32 %v299, 3.0
    %v301 = vmul.f32 %v297, %v300
    %v302 = vsub.f32 %v301, %v201
    %vm303 = vcmp.lt.f32.partialorder %v302, 0.0
    %v304 = vsel %vm303, %v297, %v294
    %v305 = vsel %vm303, %v295, %v297
    %v306 = vadd.f32 %v304, %v305
    %v307 = vmul.f32 %v306, 0.5
    %v308 = vmul.f32 %v307, 4.0
    %v309 = vmul.f32 %v308, %v307
    %v310 = vsub.f32 %v309, 3.0
    %v311 = vmul.f32 %v307, %v310
    %v312 = vsub.f32 %v311, %v201
    %vm313 = vcmp.lt.f32.partialorder %v312, 0.0
    %v314 = vsel %vm313, %v307, %v304
    %v315 = vsel %vm313, %v305, %v307
    %v316 = vadd.f32 %v314, %v315
    %v317 = vmul.f32 %v316, 0.5
    %v318 = vmul.f32 %v317, 4.0
    %v319 = vmul.f32 %v318, %v317
    %v320 = vsub.f32 %v319, 3.0
    %v321 = vmul.f32 %v317, %v320
    %v322 = vsub.f32 %v321, %v201
    %vm323 = vcmp.lt.f32.partialorder %v322, 0.0
    %v324 = vsel %vm323, %v317, %v314
    %v325 = vsel %vm323, %v315, %v317
    %v326 = vadd.f32 %v324, %v325
    %v327 = vmul.f32 %v326, 0.5
    %v328 = vmul.f32 %v327, 4.0
    %v329 = vmul.f32 %v328, %v327
    %v330 = vsub.f32 %v329, 3.0
    %v331 = vmul.f32 %v327, %v330
    %v332 = vsub.f32 %v331, %v201
    %vm333 = vcmp.lt.f32.partialorder %v332, 0.0
    %v334 = vsel %vm333, %v327, %v324
    %v335 = vsel %vm333, %v325, %v327
    %v336 = vadd.f32 %v334, %v335
    %v337 = vmul.f32 %v336, 0.5
    %v338 = vmul.f32 %v337, 4.0
    %v339 = vmul.f32 %v338, %v337
    %v340 = vsub.f32 %v339, 3.0
    %v341 = vmul.f32 %v337, %v340
    %v342 = vsub.f32 %v341, %v201
    %vm343 = vcmp.lt.f32.partialorder %v342, 0.0
    %v344 = vsel %vm343, %v337, %v334
    %v345 = vsel %vm343, %v335, %v337
    %v346 = vadd.f32 %v344, %v345
    %v347 = vmul.f32 %v346, 0.5
    %v348 = vmul.f32 %v347, 4.0
    %v349 = vmul.f32 %v348, %v347
    %v350 = vsub.f32 %v349, 3.0
    %v351 = vmul.f32 %v347, %v350
    %v352 = vsub.f32 %v351, %v201
    %vm353 = vcmp.lt.f32.partialorder %v352, 0.0
    %v354 = vsel %vm353, %v347, %v344
    %v355 = vsel %vm353, %v345, %v347
    %v356 = vadd.f32 %v354, %v355
    %v357 = vmul.f32 %v356, 0.5
    %v358 = vmul.f32 %v357, 4.0
    %v359 = vmul.f32 %v358, %v357
    %v360 = vsub.f32 %v359, 3.0
    %v361 = vmul.f32 %v357, %v360
    %v362 = vsub.f32 %v361, %v201
    %vm363 = vcmp.lt.f32.partialorder %v362, 0.0
    %v364 = vsel %vm363, %v357, %v354
    %v365 = vsel %vm363, %v355, %v357
    %v366 = vadd.f32 %v364, %v365
    %v367 = vmul.f32 %v366, 0.5
    %v368 = vmul.f32 %v367, 4.0
    %v369 = vmul.f32 %v368, %v367
    %v370 = vsub.f32 %v369, 3.0
    %v371 = vmul.f32 %v367, %v370
    %v372 = vsub.f32 %v371, %v201
    %vm373 = vcmp.lt.f32.partialorder %v372, 0.0
    %v374 = vsel %vm373, %v367, %v364
    %v375 = vsel %vm373, %v365, %v367
    %v376 = vadd.f32 %v374, %v375
    %v377 = vmul.f32 %v376, 0.5
    %v378 = vmul.f32 %v377, 4.0
    %v379 = vmul.f32 %v378, %v377
    %v380 = vsub.f32 %v379, 3.0
    %v381 = vmul.f32 %v377, %v380
    %v382 = vsub.f32 %v381, %v201
    %vm383 = vcmp.lt.f32.partialorder %v382, 0.0
    %v384 = vsel %vm383, %v377, %v374
    %v385 = vsel %vm383, %v375, %v377
    %v386 = vadd.f32 %v384, %v385
    %v387 = vmul.f32 %v386, 0.5
    %v388 = vmul.f32 %v387, 4.0
    %v389 = vmul.f32 %v388, %v387
    %v390 = vsub.f32 %v389, 3.0
    %v391 = vmul.f32 %v387, %v390
    %v392 = vsub.f32 %v391, %v201
    %vm393 = vcmp.lt.f32.partialorder %v392, 0.0
    %v394 = vsel %vm393, %v387, %v384
    %v395 = vsel %vm393, %v385, %v387
    %v396 = vadd.f32 %v394, %v395
    %v397 = vmul.f32 %v396, 0.5
    %v398 = vmul.f32 %v397, 4.0
    %v399 = vmul.f32 %v398, %v397
    %v400 = vsub.f32 %v399, 3.0
    %v401 = vmul.f32 %v397, %v400
    %v402 = vsub.f32 %v401, %v201
    %vm403 = vcmp.lt.f32.partialorder %v402, 0.0
    %v404 = vsel %vm403, %v397, %v394
    %v405 = vsel %vm403, %v395, %v397
    %v406 = vadd.f32 %v404, %v405
    %v407 = vmul.f32 %v406, 0.5
    %v408 = vmul.f32 %v407, 4.0
    %v409 = vmul.f32 %v408, %v407
    %v410 = vsub.f32 %v409, 3.0
    %v411 = vmul.f32 %v407, %v410
    %v412 = vsub.f32 %v411, %v201
    %vm413 = vcmp.lt.f32.partialorder %v412, 0.0
    %v414 = vsel %vm413, %v407, %v404
    %v415 = vsel %vm413, %v405, %v407
    %v416 = vadd.f32 %v414, %v415
    %v417 = vmul.f32 %v416, 0.5
    %v418 = vmul.f32 %v417, 4.0
    %v419 = vmul.f32 %v418, %v417
    %v420 = vsub.f32 %v419, 3.0
    %v421 = vmul.f32 %v417, %v420
    %v422 = vsub.f32 %v421, %v201
    %vm423 = vcmp.lt.f32.partialorder %v422, 0.0
    %v424 = vsel %vm423, %v417, %v414
    %v425 = vsel %vm423, %v415, %v417
    %v426 = vadd.f32 %v424, %v425
    %v427 = vmul.f32 %v426, 0.5
    %v428 = vmul.f32 %v427, 4.0
    %v429 = vmul.f32 %v428, %v427
    %v430 = vsub.f32 %v429, 3.0
    %v431 = vmul.f32 %v427, %v430
    %v432 = vsub.f32 %v431, %v201
    %vm433 = vcmp.lt.f32.partialorder %v432, 0.0
    %v434 = vsel %vm433, %v427, %v424
    %v435 = vsel %vm433, %v425, %v427
    %v436 = vmul.f32 %v175, 2.0
    %v437 = vadd.f32 %v434, %v435
    %v438 = vmul.f32 %v437, 0.5
    %v439 = vmul.f32 %v436, %v438
    %v440 = vadd.f32 %v151, %v439
    %v441 = vsub.f32 %v86, %v440
    %v442 = vsub.f32 %v95, %v440
    %v443 = vsub.f32 11.0, %v440
    %v444 = vmul.f32 %v104, %v148
    %v445 = vmul.f32 %v147, %v442
    %v446 = vsub.f32 %v444, %v445
    %v447 = vmul.f32 %v147, %v104
    %v448 = vmul.f32 %v441, %v148
    %v449 = vsub.f32 %v447, %v448
    %v450 = vmul.f32 %v441, %v442
    %v451 = vsub.f32 %v450, %v152
    %v452 = vmul.f32 %v104, %v443
    %v453 = vmul.f32 %v147, %v148
    %v454 = vsub.f32 %v452, %v453
    %v455 = vmul.f32 %v441, %v443
    %v456 = vsub.f32 %v153, %v455
    %v457 = vsub.f32 %v448, %v447
    %v458 = vmul.f32 %v442, %v443
    %v459 = vsub.f32 %v458, %v155
    %v460 = vsub.f32 %v453, %v452
    %v461 = vmul.f32 %v446, %v446
    %v462 = vmul.f32 %v449, %v449
    %v463 = vadd.f32 %v461, %v462
    %v464 = vmul.f32 %v451, %v451
    %v465 = vadd.f32 %v463, %v464
    %v466 = vmul.f32 %v454, %v454
    %v467 = vmul.f32 %v456, %v456
    %v468 = vadd.f32 %v466, %v467
    %v469 = vmul.f32 %v457, %v457
    %v470 = vadd.f32 %v468, %v469
    %v471 = vmul.f32 %v459, %v459
    %v472 = vmul.f32 %v460, %v460
    %v473 = vadd.f32 %v471, %v472
    %v474 = vadd.f32 %v473, %v461
    %vm475 = vcmp.gt.f32.partialorder %v470, %v465
    %v476 = vsel %vm475, %v454, %v446
    %v477 = vsel %vm475, %v456, %v449
    %v478 = vsel %vm475, %v457, %v451
    %v479 = vmax.f32 %v465, %v470
    %vm480 = vcmp.gt.f32.partialorder %v474, %v479
    %v481 = vsel %vm480, %v459, %v476
    %v482 = vsel %vm480, %v460, %v477
    %v483 = vsel %vm480, %v446, %v478
    %v484 = vmul.f32 %v481, %v481
    %v485 = vmul.f32 %v482, %v482
    %v486 = vadd.f32 %v484, %v485
    %v487 = vmax.f32 %v486, 1e-30
    %v488 = vrsqrt.pop %v487
    %v489 = vmul.f32 %v481, %v488
    %v490 = vmul.f32 %v482, %v488
    %v491 = vmul.f32 %v483, %v488
    %v492 = vsub.f32 %v125, %v132
    %v493 = vand.u32 2147483647, %v492
    %vm494 = vcmp.le.f32.partialorder %v493, 1e-12
    %v495 = vsub.f32 %v139, %v146
    %v496 = vand.u32 2147483647, %v495
    %vm497 = vcmp.le.f32.partialorder %v496, 1e-12
    %v498 = vsel %vm497, 0.0, %v489
    %v499 = vsel %vm494, 1.0, %v498
    %v500 = vsel %vm497, 1.0, %v490
    %v501 = vsel %vm494, 0.0, %v500
    %v502 = vsel %vm497, %v139, %v491
    %v503 = vsel %vm494, %v125, %v502
    %v504 = vmul.f32 %v499, %v59
    %v505 = vmul.f32 %v499, %v60
    %v506 = vmul.f32 %v501, %v63
    %v507 = vmul.f32 %v501, %v64
    %v508 = vadd.f32 %v504, %v506
    %v509 = vadd.f32 %v505, %v507
    %v510 = vsub.f32 %v508, %v503
    %v511 = vsub.f32 %v509, %v503
    %v512 = vmul.f32 %v510, %v510
    %v513 = vmul.f32 %v511, %v511
    %v514 = vsel %vm72, %v512, 0.0
    %v515 = vsel %vm73, %v513, 0.0
    %v516 = vadd.f32 %v514, %v515
    %v517 = vrot.slane %v516, 4
    %v518 = vadd.f32 %v516, %v517
    %v519 = vrot.slane %v518, 2
    %v520 = vadd.f32 %v518, %v519
    %v521 = vrot.slane %v520, 1
    %v522 = vadd.f32 %v520, %v521
    %523 = vst [vmem:[%s2] sm:$0x1] %v522
    // Predicated region
    $region14: #{distortion_line_errors.1} parent=1 // pred_check
      _
    $region15: #{distortion_line_errors.1} parent=1 // pred_check_branch
      %525 = sbr.rel (0) target = $region17
    $region16: #{distortion_line_errors.1} parent=1 // pred_region
      _
    $region17: #{distortion_line_errors.1} parent=1 // pred_fallthru
      _
    // Predicated region
    $region18: #{distortion_line_errors.1} parent=1 // pred_check
      _
    $region19: #{distortion_line_errors.1} parent=1 // pred_check_branch
      %527 = sbr.rel (0) target = $region21
    $region20: #{distortion_line_errors.1} parent=1 // pred_region
      _
    $region21: #{distortion_line_errors.1} parent=1 // pred_fallthru
      _
    %528 = vsyncpa [#allocation3], 1

</llo_original>
